<compile_context>
chip_gen: v6e
topology: v6e:2x2x1
jax: 0.10.0
libtpu: 0.0.40
codegen_flags: <defaults>
</compile_context>

<pallas_src>
import functools
import math

import jax
import jax.numpy as jnp
import numpy as np
from jax import lax
from jax.experimental import pallas as pl
from jax.experimental.pallas import tpu as pltpu


_TARGET_BLOCK_BYTES = 4 << 20          # ~4 MiB input blocks (~86% HBM roofline)
_VMEM_LIMIT_BYTES = 32 * 1024 * 1024   # 24 MiB double-buffered plan + headroom


# --------------------------------------------------------------------------- #
# Kernels
# --------------------------------------------------------------------------- #
def _pe_add_kernel(x_ref, pe_ref, o_ref):
    """Eval-mode forward: out = x + pe (dropout is the identity)."""
    y = x_ref[...].astype(jnp.float32) + pe_ref[...].astype(jnp.float32)
    o_ref[...] = y.astype(o_ref.dtype)


def _hash_u32(v):
    """'lowbias32' integer finalizer — uniform bits from sequential counters.

    Pure VPU int ops (xor / logical shift / 32-bit mul): portable to both real
    Mosaic and interpret mode (no pltpu.prng_* primitives)."""
    v = v ^ (v >> 16)
    v = v * jnp.uint32(0x7FEB352D)
    v = v ^ (v >> 15)
    v = v * jnp.uint32(0x846CA68B)
    v = v ^ (v >> 16)
    return v


def _pe_add_dropout_kernel(seed_ref, x_ref, pe_ref, o_ref, *,
                           keep_threshold_31, inv_keep_prob,
                           rows_per_block, row_stride_axis1, d_model):
    """Training-mode forward: out = dropout(x + pe) with inverted scaling."""
    y = x_ref[...].astype(jnp.float32) + pe_ref[...].astype(jnp.float32)

    # Global flattened element index -> counter-based Bernoulli mask.  Using
    # the global index makes the mask independent of the tile plan; mixing the
    # seed multiplicatively avoids cross-call stream aliasing.
    row0 = pl.program_id(0) * rows_per_block
    if row_stride_axis1:                              # static Python branch
        row0 = row0 + pl.program_id(1) * row_stride_axis1
    row0 = row0.astype(jnp.uint32)
    rows = lax.broadcasted_iota(jnp.int32, y.shape, 0).astype(jnp.uint32) + row0
    cols = lax.broadcasted_iota(jnp.int32, y.shape, 1).astype(jnp.uint32)
    idx = rows * jnp.uint32(d_model) + cols

    seed_mix = seed_ref[0].astype(jnp.uint32) * jnp.uint32(0x9E3779B9)
    bits = _hash_u32(idx ^ seed_mix)
    # 31-bit compare (sidesteps unsigned-compare corner cases on the VPU).
    keep = (bits >> 1).astype(jnp.int32) < jnp.int32(keep_threshold_31)

    o_ref[...] = jnp.where(keep, y * jnp.float32(inv_keep_prob),
                           jnp.float32(0.0)).astype(o_ref.dtype)


# --------------------------------------------------------------------------- #
# Host-side helpers
# --------------------------------------------------------------------------- #
def positional_encoding_matrix(seq_len, d_model):
    """Same construction as PositionalEncoding._postional_encoding_matrix."""
    position = jnp.arange(seq_len, dtype=jnp.float32)[:, None]        # (S, 1)
    embedding = jnp.arange(0, d_model, 2, dtype=jnp.float32)          # (D/2,)
    div_term = jnp.exp(embedding * (-(math.log(10000.0) / d_model)))
    angles = position * div_term                                      # (S, D/2)
    pe = jnp.zeros((seq_len, d_model), dtype=jnp.float32)
    pe = pe.at[:, 0::2].set(jnp.sin(angles))
    pe = pe.at[:, 1::2].set(jnp.cos(angles))
    return pe                                                         # (S, D)


def _sublane_multiple(dtype):
    """Sublane packing granularity: 8 rows f32, 16 bf16, 32 int8/fp8."""
    return max(8, 32 // jnp.dtype(dtype).itemsize)


def _launch(x_arr, pe_arr, *, grid, x_spec, pe_spec, out_spec, out_shape,
            dim_sem, use_dropout, dropout_rate, seed,
            rows_per_block, row_stride_axis1, d_model):
    cparams = pltpu.CompilerParams(dimension_semantics=dim_sem,
                                   vmem_limit_bytes=_VMEM_LIMIT_BYTES)
    if not use_dropout:                       # eval mode: dropout == identity
        return pl.pallas_call(
            _pe_add_kernel, out_shape=out_shape, grid=grid,
            in_specs=[x_spec, pe_spec], out_specs=out_spec,
            compiler_params=cparams,
        )(x_arr, pe_arr)

    keep_prob = 1.0 - float(dropout_rate)
    thr31 = min(int(round(keep_prob * (1 << 31))), (1 << 31) - 1)
    kernel = functools.partial(
        _pe_add_dropout_kernel,
        keep_threshold_31=thr31, inv_keep_prob=1.0 / keep_prob,
        rows_per_block=rows_per_block, row_stride_axis1=row_stride_axis1,
        d_model=d_model)
    seed_arr = jnp.asarray([seed], dtype=jnp.int32)
    return pl.pallas_call(
        kernel, out_shape=out_shape, grid=grid,
        in_specs=[pl.BlockSpec(memory_space=pltpu.MemorySpace.SMEM),
                  x_spec, pe_spec],
        out_specs=out_spec,
        compiler_params=cparams,
    )(seed_arr, x_arr, pe_arr)


def positional_encoding_forward(x, pe, *, dropout_rate=0.0, training=False,
                                seed=0):
    """x: (B, S, D); pe: (seq_len, D) sin/cos table with seq_len >= S."""
    B, S, D = x.shape
    assert pe.shape[0] >= S and pe.shape[1] == D
    pe = pe[:S].astype(x.dtype)   # ship pe at x.dtype; f32 math stays in-kernel

    itemsize = jnp.dtype(x.dtype).itemsize
    sub = _sublane_multiple(x.dtype)
    row_bytes = D * itemsize
    target_rows = max(sub, _TARGET_BLOCK_BYTES // row_bytes)
    use_dropout = bool(training) and float(dropout_rate) > 0.0

    # ---- Plan A: fold batch into the row axis (small / medium S). ---------- #
    if S <= target_rows:
        R = B * S
        reps = min(B, max(1, target_rows // S))
        # v7x megacore: keep >= 2 blocks when there is enough data to matter.
        if reps == B and B >= 2 and R * row_bytes > (2 << 20):
            reps = (B + 1) // 2
        # Dtype-aware sublane alignment of the tile where a multiple-of-S
        # tile allows it.
        step = sub // math.gcd(S, sub)
        if reps >= step:
            reps = (reps // step) * step
        rows_tile = reps * S
        if rows_tile == R or rows_tile % sub == 0:
            x2 = x.reshape(R, D)
            pe_blk = jnp.tile(pe, (reps, 1))      # (rows_tile, D), resident
            out = _launch(
                x2, pe_blk,
                grid=(pl.cdiv(R, rows_tile),),
                x_spec=pl.BlockSpec((rows_tile, D), lambda i: (i, 0)),
                pe_spec=pl.BlockSpec((rows_tile, D), lambda i: (0, 0)),
                out_spec=pl.BlockSpec((rows_tile, D), lambda i: (i, 0)),
                out_shape=jax.ShapeDtypeStruct((R, D), x.dtype),
                dim_sem=("parallel",),
                use_dropout=use_dropout, dropout_rate=dropout_rate, seed=seed,
                rows_per_block=rows_tile, row_stride_axis1=0, d_model=D)
            return out.reshape(B, S, D)

    # ---- Plan B: long sequences — tile along S, batch fastest grid axis ---- #
    # (pe block index unchanged across batch => resident, not re-DMA'd).
    s_tile = S if S <= target_rows else max(sub, (target_rows // sub) * sub)
    return _launch(
        x, pe,
        grid=(pl.cdiv(S, s_tile), B),
        x_spec=pl.BlockSpec((None, s_tile, D), lambda si, b: (b, si, 0)),
        pe_spec=pl.BlockSpec((s_tile, D), lambda si, b: (si, 0)),
        out_spec=pl.BlockSpec((None, s_tile, D), lambda si, b: (b, si, 0)),
        out_shape=jax.ShapeDtypeStruct((B, S, D), x.dtype),
        dim_sem=("parallel", "parallel"),
        use_dropout=use_dropout, dropout_rate=dropout_rate, seed=seed,
        rows_per_block=s_tile, row_stride_axis1=S, d_model=D)


# --------------------------------------------------------------------------- #
# Demo / correctness check
# --------------------------------------------------------------------------- #
if __name__ == "__main__":
    key = jax.random.PRNGKey(0)
    B, S, D = 2, 16, 128          # batch=2, seq=16, d_model=128 (lane dense)
    seq_len = 16                  # module's seq_len (>= x.shape[1])
    dropout_rate = 0.1

    x = jax.random.normal(key, (B, S, D), dtype=jnp.float32)
    pe = positional_encoding_matrix(seq_len, D)

    # --- Eval-mode forward (dropout = identity): must match reference. ---
    out = positional_encoding_forward(x, pe, dropout_rate=dropout_rate,
                                      training=False)
    out = jax.block_until_ready(out)
    ref = x + pe[None, :S, :]
    np.testing.assert_allclose(np.asarray(out), np.asarray(ref),
                               rtol=1e-6, atol=1e-6)

    # --- Training-mode forward: in-kernel counter-based dropout. ---
    out_t = positional_encoding_forward(x, pe, dropout_rate=dropout_rate,
                                        training=True, seed=1234)
    out_t = jax.block_until_ready(out_t)
    out_t_np = np.asarray(out_t)
    keep_prob = 1.0 - dropout_rate
    ref_scaled = np.asarray(ref) * np.float32(1.0 / keep_prob)
    kept = out_t_np != 0.0
    # Kept elements equal (x + pe) / keep_prob; dropped fraction ~ dropout_rate.
    np.testing.assert_allclose(out_t_np[kept], ref_scaled[kept],
                               rtol=1e-5, atol=1e-5)
    drop_frac = 1.0 - kept.mean()
    assert 0.0 < drop_frac < 0.3, f"dropout fraction {drop_frac} implausible"

    print("KERNEL_OK")
</pallas_src>

<mosaic_0001>
module attributes {stable_mosaic.version = 11 : i64} {
  func.func @_pe_add_kernel(%arg0: i32, %arg1: memref<32x128xf32, #tpu.memory_space<vmem>>, %arg2: memref<32x128xf32, #tpu.memory_space<vmem>>, %arg3: memref<32x128xf32, #tpu.memory_space<vmem>>) attributes {dimension_semantics = [#tpu.dimension_semantics<parallel>], iteration_bounds = array<i64: 1>, scalar_prefetch = 0 : i64, scratch_operands = 0 : i64, tpu.core_type = #tpu.core_type<tc>, window_params = [{transform_indices = @transform_0, window_bounds = array<i64: 32, 128>}, {pipeline_mode = #tpu.pipeline_mode<synchronous>, transform_indices = @transform_1, window_bounds = array<i64: 32, 128>}, {transform_indices = @transform_2, window_bounds = array<i64: 32, 128>}]} {
    %c0 = arith.constant 0 : index
    %c0_0 = arith.constant 0 : index
    %0 = vector.load %arg1[%c0, %c0_0] : memref<32x128xf32, #tpu.memory_space<vmem>>, vector<32x128xf32>
    %c0_1 = arith.constant 0 : index
    %c0_2 = arith.constant 0 : index
    %1 = vector.load %arg2[%c0_1, %c0_2] : memref<32x128xf32, #tpu.memory_space<vmem>>, vector<32x128xf32>
    %2 = arith.addf %0, %1 : vector<32x128xf32>
    %c0_3 = arith.constant 0 : index
    %c0_4 = arith.constant 0 : index
    %3 = vector.load %arg3[%c0_3, %c0_4] : memref<32x128xf32, #tpu.memory_space<vmem>>, vector<32x128xf32>
    tpu.vector_store %arg3[%c0_3, %c0_4], %2 {strides = array<i32>} : memref<32x128xf32, #tpu.memory_space<vmem>>, vector<32x128xf32>,
    return
  }
  func.func @transform_0(%arg0: i32) -> (i32, i32) {
    %c0_i32 = arith.constant 0 : i32
    %c0_i32_0 = arith.constant 0 : i32
    return %arg0, %c0_i32 : i32, i32
  }
  func.func @transform_1(%arg0: i32) -> (i32, i32) {
    %c0_i32 = arith.constant 0 : i32
    %c0_i32_0 = arith.constant 0 : i32
    %c0_i32_1 = arith.constant 0 : i32
    return %c0_i32, %c0_i32_0 : i32, i32
  }
  func.func @transform_2(%arg0: i32) -> (i32, i32) {
    %c0_i32 = arith.constant 0 : i32
    %c0_i32_0 = arith.constant 0 : i32
    return %arg0, %c0_i32 : i32, i32
  }
}

</mosaic_0001>

<llo_original>
// kernel: tpu_custom_call.1
$region0: #{tpu_custom_call.1}
  #allocation0 [shape = 'u32[]', space=smem, size = 0x4, offset = 0x4, fixed_abs, tag = 'smem constant byte address 0x4 - core index']
  #allocation1 [shape = 'u32[144,128]{1,0:T(1,128)}', space=vmem, size = 0x12000, scoped, tag = 'internal scratch']
  %s0 = inlined_call_operand.hbm [shape: f32[32,128], index: 0, kind: input, shape index: {}]
  %s1 = inlined_call_operand.hbm [shape: f32[32,128], index: 1, kind: input, shape index: {}]
  %s2 = inlined_call_operand.hbm [shape: f32[32,128], index: 2, kind: output, shape index: {}]
  %s3 = sld [smem:[#allocation0]]
  $region26: #{tpu_custom_call.1} parent=0
    _
  %s5 = ssub.s32 1, %s3
  %s6 = scalar_select 0, %s5, %s3
  $region1: #{tpu_custom_call.1} parent=0
    #allocation2 [shape = 'u8[16384]{0}', space=vmem, size = 0x4000, scoped, tag = 'input window, operand 0, single buffered']
    #allocation3 [shape = 's32[1]{0}', space=sflag, size = 0x4, scoped, tag = 'scoped memory for tpu_custom_call.1']
    #allocation4 [shape = 's32[1]{0}', space=sflag, size = 0x4, scoped, tag = 'scoped memory for tpu_custom_call.1']
    #allocation5 [shape = 'u8[16384]{0}', space=vmem, size = 0x4000, scoped, tag = 'input window, operand 1, single buffered']
    #allocation6 [shape = 's32[1]{0}', space=sflag, size = 0x4, scoped, tag = 'scoped memory for tpu_custom_call.1']
    #allocation7 [shape = 'u8[16384]{0}', space=vmem, size = 0x4000, scoped, tag = 'output window, operand 0, single buffered']
    %7 = vsyncpa [#allocation3], 0
    %8 = vsyncpa [#allocation6], 0
    %9 = vsyncpa [#allocation4], 0
    // Predicated region
    $region2: #{tpu_custom_call.1} parent=1 // pred_check
      _
    $region3: #{tpu_custom_call.1} parent=1 // pred_check_branch
      %11 = sbr.rel (0) target = $region5
    $region4: #{tpu_custom_call.1} parent=1 // pred_region
      %s13 = ssub.s32 512, 512
      %14 = vsyncadd [#allocation3], %s13
      %s15 = sshll.u32 [#allocation2], 4
      %s16 = int_to_ptr.vmem [resolvable:$true] %s15
      %21 = dma.hbm_to_vmem [thread:$0]  %s0, 512, %s16, [#allocation3], 128, 128, 8
    $region5: #{tpu_custom_call.1} parent=1 // pred_fallthru
      _
    // Predicated region
    $region6: #{tpu_custom_call.1} parent=1 // pred_check
      _
    $region7: #{tpu_custom_call.1} parent=1 // pred_check_branch
      %23 = sbr.rel (0) target = $region9
    $region8: #{tpu_custom_call.1} parent=1 // pred_region
      %s25 = ssub.s32 512, 512
      %26 = vsyncadd [#allocation6], %s25
      %s27 = sshll.u32 [#allocation5], 4
      %s28 = int_to_ptr.vmem [resolvable:$true] %s27
      %33 = dma.hbm_to_vmem [thread:$0]  %s1, 512, %s28, [#allocation6], 128, 128, 8
    $region9: #{tpu_custom_call.1} parent=1 // pred_fallthru
      _
    // Predicated region
    $region10: #{tpu_custom_call.1} parent=1 // pred_check
      _
    $region11: #{tpu_custom_call.1} parent=1 // pred_check_branch
      %35 = sbr.rel (0) target = $region13
    $region12: #{tpu_custom_call.1} parent=1 // pred_region
      %36 = dma.done [#allocation3], 512
    $region13: #{tpu_custom_call.1} parent=1 // pred_fallthru
      _
    // Predicated region
    $region14: #{tpu_custom_call.1} parent=1 // pred_check
      _
    $region15: #{tpu_custom_call.1} parent=1 // pred_check_branch
      %38 = sbr.rel (0) target = $region17
    $region16: #{tpu_custom_call.1} parent=1 // pred_region
      %39 = dma.done [#allocation6], 512
    $region17: #{tpu_custom_call.1} parent=1 // pred_fallthru
      _
    %v40 = vld [vmem:[#allocation2] sm:$0xff]
    %v41 = vld [vmem:[#allocation2 + $0x8] sm:$0xff]
    %v42 = vld [vmem:[#allocation2 + $0x10] sm:$0xff]
    %v43 = vld [vmem:[#allocation2 + $0x18] sm:$0xff]
    %v44 = vld [vmem:[#allocation5] sm:$0xff]
    %v45 = vld [vmem:[#allocation5 + $0x8] sm:$0xff]
    %v46 = vld [vmem:[#allocation5 + $0x10] sm:$0xff]
    %v47 = vld [vmem:[#allocation5 + $0x18] sm:$0xff]
    %v48 = vadd.f32 %v40, %v44
    %v49 = vadd.f32 %v41, %v45
    %v50 = vadd.f32 %v42, %v46
    %v51 = vadd.f32 %v43, %v47
    %52 = vst [vmem:[#allocation7] sm:$0xff] %v48
    %53 = vst [vmem:[#allocation7 + $0x8] sm:$0xff] %v49
    %54 = vst [vmem:[#allocation7 + $0x10] sm:$0xff] %v50
    %55 = vst [vmem:[#allocation7 + $0x18] sm:$0xff] %v51
    // Predicated region
    $region18: #{tpu_custom_call.1} parent=1 // pred_check
      _
    $region19: #{tpu_custom_call.1} parent=1 // pred_check_branch
      %57 = sbr.rel (0) target = $region21
    $region20: #{tpu_custom_call.1} parent=1 // pred_region
      %s59 = ssub.s32 512, 512
      %60 = vsyncadd [#allocation4], %s59
      %s61 = sshll.u32 [#allocation7], 4
      %s62 = int_to_ptr.vmem [resolvable:$true] %s61
      %67 = dma.vmem_to_hbm [thread:$0]  %s62, 512, %s2, [#allocation4], 128, 128, 8
    $region21: #{tpu_custom_call.1} parent=1 // pred_fallthru
      _
    // Predicated region
    $region22: #{tpu_custom_call.1} parent=1 // pred_check
      _
    $region23: #{tpu_custom_call.1} parent=1 // pred_check_branch
      %69 = sbr.rel (0) target = $region25
    $region24: #{tpu_custom_call.1} parent=1 // pred_region
      %70 = dma.done [#allocation4], 512
    $region25: #{tpu_custom_call.1} parent=1 // pred_fallthru
      _
    %71 = vsyncpa [#allocation3], 1
    %72 = vsyncpa [#allocation6], 1
    %73 = vsyncpa [#allocation4], 1

</llo_original>
